<compile_context>
chip_gen: v7x
topology: tpu7x:2x2x1
jax: 0.10.0
libtpu: 0.0.40
codegen_flags: <defaults>
</compile_context>

<pallas_src>
import functools

import jax
import jax.numpy as jnp
from jax import lax
from jax.experimental import pallas as pl
from jax.experimental.pallas import tpu as pltpu


# Total VMEM budget for the double-buffered x tile (2 buffers).
_X_VMEM_BUDGET = 16 * 1024 * 1024
_VMEM_LIMIT_BYTES = 32 * 1024 * 1024


def adnet_loss_kernel(n_total, inv_n, tn,
                      x_ref, w_ref, fscal_ref, iscal_ref, loss_ref, acc_ref):
    """x_ref: [H, TN] VMEM tile of x^T (native dtype); w_ref: [1, H] f32 VMEM
    (collapsed W1@W2 row); fscal_ref: [3] f32 SMEM = (b_eff, D_s, D_t);
    iscal_ref: [1] i32 SMEM = (source_size,); loss_ref: [1, 1] f32 VMEM;
    acc_ref: [1, 1] f32 VMEM scratch accumulator."""
    i = pl.program_id(0)

    @pl.when(i == 0)
    def _():
        acc_ref[...] = jnp.zeros_like(acc_ref)

    b_eff = fscal_ref[0]
    d_s = fscal_ref[1]
    d_t = fscal_ref[2]
    n_src = iscal_ref[0]

    # Collapsed MLP: lane-dense GEMV  w[1,H] @ xT[H,TN] -> z[1,TN] on the MXU,
    # f32 accumulation regardless of x's storage dtype.
    x = x_ref[...].astype(jnp.float32)                               # [H, TN]
    z = jnp.dot(w_ref[...], x,
                preferred_element_type=jnp.float32) + b_eff          # [1, TN]
    y = jax.nn.sigmoid(z)                                            # [1, TN]

    # Global sample index for this tile (lane axis), for domain split + tail mask.
    col = i * tn + lax.broadcasted_iota(jnp.int32, z.shape, 1)       # [1, TN]
    is_src = col < n_src       # source rows: target t = 1
    valid = col < n_total      # mask tail padding of the last block

    dfake = jnp.where(is_src, d_s, d_t)
    y = jnp.abs(y - dfake)

    # BCE with t in {0,1}: one log per element; torch clamps each log at -100.
    arg = jnp.where(is_src, y, 1.0 - y)
    per_elem = -jnp.maximum(jnp.log(arg), -100.0)
    per_elem = jnp.where(valid, per_elem, 0.0)

    acc_ref[...] += jnp.sum(per_elem, axis=1, keepdims=True)         # [1, 1]

    @pl.when(i == pl.num_programs(0) - 1)
    def _():
        loss_ref[...] = acc_ref[...] * inv_n


def adversarial_network_loss(xfeature, w1, b1, w2, b2,
                             D_s, D_t, source_size, target_size):
    n, hidden = xfeature.shape
    assert n == source_size + target_size

    w1f = w1.astype(jnp.float32)
    b1f = b1.astype(jnp.float32)
    w2f = w2.astype(jnp.float32)
    b2f = b2.astype(jnp.float32)

    # Collapse Linear(H,64) o Linear(64,1): (xW1 + b1)W2 + b2 = x(W1W2) + (b1W2 + b2)
    w_eff = (w1f @ w2f).reshape(1, hidden)                # [1, H] f32 row
    b_eff = (b1f @ w2f + b2f)[0]                          # scalar

    # Samples on the lane axis (lane-dense chain). x keeps its NATIVE dtype
    # (bf16 input halves HBM traffic); ideally upstream already produces [H, N].
    x_t = xfeature.T                                      # [H, N]

    fscal = jnp.stack([b_eff,
                       jnp.asarray(D_s, jnp.float32),
                       jnp.asarray(D_t, jnp.float32)])    # [3] f32
    iscal = jnp.asarray([source_size], dtype=jnp.int32)   # [1] i32

    # Tile size: whole batch if it fits the double-buffer budget, otherwise the
    # largest 128-multiple of samples whose double-buffered (H, TN) tile fits.
    itemsize = jnp.dtype(xfeature.dtype).itemsize
    if 2 * n * hidden * itemsize <= _X_VMEM_BUDGET:
        tn = n
    else:
        tn = (_X_VMEM_BUDGET // (2 * hidden * itemsize)) // 128 * 128
        tn = max(tn, 128)
    num_blocks = pl.cdiv(n, tn)
    inv_n = 1.0 / float(n)

    kernel = functools.partial(adnet_loss_kernel, n, inv_n, tn)

    loss = pl.pallas_call(
        kernel,
        out_shape=jax.ShapeDtypeStruct((1, 1), jnp.float32),
        grid_spec=pltpu.PrefetchScalarGridSpec(
            num_scalar_prefetch=0,
            grid=(num_blocks,),
            in_specs=[
                pl.BlockSpec((hidden, tn), lambda i: (0, i)),          # x^T tile
                pl.BlockSpec((1, hidden), lambda i: (0, 0)),           # w_eff row
                pl.BlockSpec(memory_space=pltpu.MemorySpace.SMEM),     # (b_eff,D_s,D_t)
                pl.BlockSpec(memory_space=pltpu.MemorySpace.SMEM),     # (source_size,)
            ],
            out_specs=pl.BlockSpec((1, 1), lambda i: (0, 0)),
            scratch_shapes=[pltpu.VMEM((1, 1), jnp.float32)],
        ),
        compiler_params=pltpu.CompilerParams(
            dimension_semantics=("arbitrary",),
            vmem_limit_bytes=_VMEM_LIMIT_BYTES,
        ),
    )(x_t, w_eff, fscal, iscal)

    return loss[0, 0]


def _reference_loss(xfeature, w1, b1, w2, b2, D_s, D_t, source_size, target_size):
    """Pure-JAX reference in the original two-matmul form (sanity check)."""
    y = xfeature @ w1 + b1
    y = y @ w2 + b2
    y = jax.nn.sigmoid(y)
    dfake = jnp.concatenate([jnp.full((source_size, 1), D_s, jnp.float32),
                             jnp.full((target_size, 1), D_t, jnp.float32)], axis=0)
    t = jnp.concatenate([jnp.ones((source_size, 1), jnp.float32),
                         jnp.zeros((target_size, 1), jnp.float32)], axis=0)
    y = jnp.abs(y - dfake)
    log_y = jnp.maximum(jnp.log(y), -100.0)
    log_1my = jnp.maximum(jnp.log(1.0 - y), -100.0)
    return jnp.mean(-(t * log_y + (1.0 - t) * log_1my))


if __name__ == "__main__":
    key = jax.random.PRNGKey(0)
    hidden_size = 32
    source_size, target_size = 4, 4
    n = source_size + target_size

    k1, k2, k3, k4, k5 = jax.random.split(key, 5)

    # Deterministic PyTorch-style Linear init: U(-1/sqrt(fan_in), 1/sqrt(fan_in)).
    bound1 = 1.0 / float(hidden_size) ** 0.5
    w1 = jax.random.uniform(k1, (hidden_size, 64), jnp.float32, -bound1, bound1)
    b1 = jax.random.uniform(k2, (64,), jnp.float32, -bound1, bound1)
    bound2 = 1.0 / 64.0 ** 0.5
    w2 = jax.random.uniform(k3, (64, 1), jnp.float32, -bound2, bound2)
    b2 = jax.random.uniform(k4, (1,), jnp.float32, -bound2, bound2)

    xfeature = jax.random.normal(k5, (n, hidden_size), jnp.float32)
    D_s, D_t = 0.3, 0.7

    loss = adversarial_network_loss(xfeature, w1, b1, w2, b2,
                                    D_s, D_t, source_size, target_size)
    loss = jax.block_until_ready(loss)

    ref = jax.block_until_ready(
        _reference_loss(xfeature, w1, b1, w2, b2, D_s, D_t,
                        source_size, target_size))
    assert abs(float(loss) - float(ref)) <= 1e-4 * max(1.0, abs(float(ref))), \
        (float(loss), float(ref))
    print("KERNEL_OK")
</pallas_src>

<mosaic_0001>
module attributes {stable_mosaic.version = 11 : i64} {
  func.func @adnet_loss_kernel(%arg0: i32, %arg1: memref<32x8xf32, #tpu.memory_space<vmem>>, %arg2: memref<1x32xf32, #tpu.memory_space<vmem>>, %arg3: memref<3xf32, #tpu.memory_space<smem>>, %arg4: memref<1xi32, #tpu.memory_space<smem>>, %arg5: memref<1x1xf32, #tpu.memory_space<vmem>>, %arg6: memref<1x1xf32, #tpu.memory_space<vmem>>) attributes {dimension_semantics = [#tpu.dimension_semantics<arbitrary>], iteration_bounds = array<i64: 1>, scalar_prefetch = 0 : i64, scratch_operands = 1 : i64, tpu.core_type = #tpu.core_type<tc>, window_params = [{transform_indices = @transform_0, window_bounds = array<i64: 32, 8>}, {pipeline_mode = #tpu.pipeline_mode<synchronous>, transform_indices = @transform_1, window_bounds = array<i64: 1, 32>}, {transform_indices = @transform_2, window_bounds = array<i64: 3>}, {transform_indices = @transform_3, window_bounds = array<i64: 1>}, {pipeline_mode = #tpu.pipeline_mode<synchronous>, transform_indices = @transform_4, window_bounds = array<i64: 1, 1>}]} {
    %c0_i32 = arith.constant 0 : i32
    %0 = arith.cmpi eq, %arg0, %c0_i32 : i32
    %1 = arith.extui %0 : i1 to i32
    %c0_i32_0 = arith.constant 0 : i32
    %2 = arith.cmpi ne, %1, %c0_i32_0 : i32
    scf.if %2 {
      %cst_19 = arith.constant 0.000000e+00 : f32
      %48 = vector.broadcast %cst_19 : f32 to vector<1x1xf32>
      %c0_20 = arith.constant 0 : index
      %c0_21 = arith.constant 0 : index
      %49 = vector.load %arg6[%c0_20, %c0_21] : memref<1x1xf32, #tpu.memory_space<vmem>>, vector<1x1xf32>
      tpu.vector_store %arg6[%c0_20, %c0_21], %48 {strides = array<i32>} : memref<1x1xf32, #tpu.memory_space<vmem>>, vector<1x1xf32>,
    } else {
    }
    %c0 = arith.constant 0 : index
    %3 = memref.load %arg3[%c0] : memref<3xf32, #tpu.memory_space<smem>>
    %c1 = arith.constant 1 : index
    %4 = memref.load %arg3[%c1] : memref<3xf32, #tpu.memory_space<smem>>
    %c2 = arith.constant 2 : index
    %5 = memref.load %arg3[%c2] : memref<3xf32, #tpu.memory_space<smem>>
    %c0_1 = arith.constant 0 : index
    %6 = memref.load %arg4[%c0_1] : memref<1xi32, #tpu.memory_space<smem>>
    %c0_2 = arith.constant 0 : index
    %c0_3 = arith.constant 0 : index
    %7 = vector.load %arg1[%c0_2, %c0_3] : memref<32x8xf32, #tpu.memory_space<vmem>>, vector<32x8xf32>
    %c0_4 = arith.constant 0 : index
    %c0_5 = arith.constant 0 : index
    %8 = vector.load %arg2[%c0_4, %c0_5] : memref<1x32xf32, #tpu.memory_space<vmem>>, vector<1x32xf32>
    %cst = arith.constant dense<0.000000e+00> : vector<1x8xf32>
    %9 = tpu.matmul %8, %7, %cst {dimension_numbers = #tpu.dot_dimension_numbers<[1], [0], [0], [1], [0, 0, 1, 1], [], []>} : vector<1x32xf32>, vector<32x8xf32>, vector<1x8xf32> -> vector<1x8xf32>
    %10 = vector.broadcast %3 : f32 to vector<1x8xf32>
    %11 = arith.addf %9, %10 : vector<1x8xf32>
    %12 = arith.negf %11 : vector<1x8xf32>
    %13 = math.exp %12 : vector<1x8xf32>
    %cst_6 = arith.constant 1.000000e+00 : f32
    %14 = vector.broadcast %cst_6 : f32 to vector<1x8xf32>
    %15 = arith.addf %14, %13 : vector<1x8xf32>
    %16 = arith.divf %14, %15 : vector<1x8xf32>
    %c8_i32 = arith.constant 8 : i32
    %17 = arith.muli %arg0, %c8_i32 : i32
    %18 = tpu.iota {dimensions = array<i32: 1>} : vector<1x8xi32>
    %19 = vector.broadcast %17 : i32 to vector<1x8xi32>
    %20 = arith.addi %19, %18 : vector<1x8xi32>
    %21 = vector.broadcast %6 : i32 to vector<1x8xi32>
    %22 = arith.cmpi slt, %20, %21 : vector<1x8xi32>
    %c8_i32_7 = arith.constant 8 : i32
    %23 = vector.broadcast %c8_i32_7 : i32 to vector<1x8xi32>
    %24 = arith.cmpi slt, %20, %23 : vector<1x8xi32>
    %25 = vector.broadcast %4 : f32 to vector<1x8xf32>
    %26 = vector.broadcast %5 : f32 to vector<1x8xf32>
    %27 = arith.select %22, %25, %26 : vector<1x8xi1>, vector<1x8xf32>
    %28 = arith.subf %16, %27 : vector<1x8xf32>
    %29 = math.absf %28 : vector<1x8xf32>
    %cst_8 = arith.constant 1.000000e+00 : f32
    %30 = vector.broadcast %cst_8 : f32 to vector<1x8xf32>
    %31 = arith.subf %30, %29 : vector<1x8xf32>
    %32 = arith.select %22, %29, %31 : vector<1x8xi1>, vector<1x8xf32>
    %33 = math.log %32 : vector<1x8xf32>
    %cst_9 = arith.constant -1.000000e+02 : f32
    %34 = vector.broadcast %cst_9 : f32 to vector<1x8xf32>
    %35 = arith.maximumf %33, %34 : vector<1x8xf32>
    %cst_10 = arith.constant 0.000000e+00 : f32
    %36 = vector.broadcast %cst_10 : f32 to vector<1x8xf32>
    %37 = arith.subf %36, %35 : vector<1x8xf32>
    %cst_11 = arith.constant 0.000000e+00 : f32
    %38 = vector.broadcast %cst_11 : f32 to vector<1x8xf32>
    %39 = arith.select %24, %37, %38 : vector<1x8xi1>, vector<1x8xf32>
    %c0_12 = arith.constant 0 : index
    %c0_13 = arith.constant 0 : index
    %40 = vector.load %arg6[%c0_12, %c0_13] : memref<1x1xf32, #tpu.memory_space<vmem>>, vector<1x1xf32>
    %cst_14 = arith.constant dense<0.000000e+00> : vector<1xf32>
    %41 = vector.multi_reduction <add>, %39, %cst_14 [1] : vector<1x8xf32> to vector<1xf32>
    %42 = vector.shape_cast %41 : vector<1xf32> to vector<1x1xf32>
    %43 = arith.addf %40, %42 : vector<1x1xf32>
    %c0_15 = arith.constant 0 : index
    %c0_16 = arith.constant 0 : index
    %44 = vector.load %arg6[%c0_15, %c0_16] : memref<1x1xf32, #tpu.memory_space<vmem>>, vector<1x1xf32>
    tpu.vector_store %arg6[%c0_15, %c0_16], %43 {strides = array<i32>} : memref<1x1xf32, #tpu.memory_space<vmem>>, vector<1x1xf32>,
    %c0_i32_17 = arith.constant 0 : i32
    %45 = arith.cmpi eq, %arg0, %c0_i32_17 : i32
    %46 = arith.extui %45 : i1 to i32
    %c0_i32_18 = arith.constant 0 : i32
    %47 = arith.cmpi ne, %46, %c0_i32_18 : i32
    scf.if %47 {
      %c0_19 = arith.constant 0 : index
      %c0_20 = arith.constant 0 : index
      %48 = vector.load %arg6[%c0_19, %c0_20] : memref<1x1xf32, #tpu.memory_space<vmem>>, vector<1x1xf32>
      %cst_21 = arith.constant 1.250000e-01 : f32
      %49 = vector.broadcast %cst_21 : f32 to vector<1x1xf32>
      %50 = arith.mulf %48, %49 : vector<1x1xf32>
      %c0_22 = arith.constant 0 : index
      %c0_23 = arith.constant 0 : index
      %51 = vector.load %arg5[%c0_22, %c0_23] : memref<1x1xf32, #tpu.memory_space<vmem>>, vector<1x1xf32>
      tpu.vector_store %arg5[%c0_22, %c0_23], %50 {strides = array<i32>} : memref<1x1xf32, #tpu.memory_space<vmem>>, vector<1x1xf32>,
    } else {
    }
    return
  }
  func.func @transform_0(%arg0: i32) -> (i32, i32) {
    %c0_i32 = arith.constant 0 : i32
    %c0_i32_0 = arith.constant 0 : i32
    return %c0_i32, %arg0 : i32, i32
  }
  func.func @transform_1(%arg0: i32) -> (i32, i32) {
    %c0_i32 = arith.constant 0 : i32
    %c0_i32_0 = arith.constant 0 : i32
    %c0_i32_1 = arith.constant 0 : i32
    return %c0_i32, %c0_i32_0 : i32, i32
  }
  func.func @transform_2(%arg0: i32) -> i32 {
    %c0_i32 = arith.constant 0 : i32
    %c0_i32_0 = arith.constant 0 : i32
    return %c0_i32 : i32
  }
  func.func @transform_3(%arg0: i32) -> i32 {
    %c0_i32 = arith.constant 0 : i32
    %c0_i32_0 = arith.constant 0 : i32
    return %c0_i32 : i32
  }
  func.func @transform_4(%arg0: i32) -> (i32, i32) {
    %c0_i32 = arith.constant 0 : i32
    %c0_i32_0 = arith.constant 0 : i32
    %c0_i32_1 = arith.constant 0 : i32
    return %c0_i32, %c0_i32_0 : i32, i32
  }
}

</mosaic_0001>

<llo_original>
// kernel: tpu_custom_call.1
$region0: #{tpu_custom_call.1}
  #allocation0 [shape = 'u32[]', space=smem, size = 0x4, offset = 0x4, fixed_abs, tag = 'smem constant byte address 0x4 - core index']
  #allocation1 [shape = 'u32[144,128]{1,0:T(1,128)}', space=vmem, size = 0x12000, scoped, tag = 'internal scratch']
  #allocation2 [shape = 'f32[1,1]{1,0:T(1,128)}', space=vmem, size = 0x200, scoped, tag = 'scratch operand']
  #allocation3 [shape = 's32[1]{0:T(128)S(6)}', space=smem, size = 0x200, scoped, tag = 'scoped memory for tpu_custom_call.1']
  %s0 = inlined_call_operand.vmem [shape: f32[32,8], index: 0, kind: input, shape index: {}]
  %s1 = inlined_call_operand.vmem [shape: f32[1,32], index: 1, kind: input, shape index: {}]
  %s2 = inlined_call_operand.vmem [shape: f32[3], index: 2, kind: input, shape index: {}]
  %s3 = inlined_call_operand.<no memory space> [shape: s32[1], index: 3, kind: input, shape index: {}]
  %s4 = inlined_call_operand.hbm [shape: f32[1,1], index: 4, kind: output, shape index: {}]
  %s5 = sld [smem:[#allocation0]]
  $region38: #{tpu_custom_call.1} parent=0
    _
  %s7 = ssub.s32 1, %s5
  %s8 = scalar_select 0, %s7, %s5
  %9 = sst [smem:[#allocation3]] %s3
  $region1: #{tpu_custom_call.1} parent=0
    #allocation4 [shape = 'u8[512]{0}', space=smem, size = 0x200, scoped, tag = 'input window, operand 2, single buffered']
    #allocation5 [shape = 's32[1]{0}', space=sflag, size = 0x4, scoped, tag = 'scoped memory for tpu_custom_call.1']
    #allocation6 [shape = 's32[1]{0}', space=sflag, size = 0x4, scoped, tag = 'scoped memory for tpu_custom_call.1']
    #allocation7 [shape = 'u8[512]{0}', space=vmem, size = 0x400, scoped, tag = 'output window, operand 0, single buffered']
    %10 = vsyncpa [#allocation6], 0
    %11 = vsyncpa [#allocation5], 0
    // Predicated region
    $region2: #{tpu_custom_call.1} parent=1 // pred_check
      _
    $region3: #{tpu_custom_call.1} parent=1 // pred_check_branch
      %13 = sbr.rel (0) target = $region5
    $region4: #{tpu_custom_call.1} parent=1 // pred_region
      _
    $region5: #{tpu_custom_call.1} parent=1 // pred_fallthru
      _
    // Predicated region
    $region6: #{tpu_custom_call.1} parent=1 // pred_check
      _
    $region7: #{tpu_custom_call.1} parent=1 // pred_check_branch
      %15 = sbr.rel (0) target = $region9
    $region8: #{tpu_custom_call.1} parent=1 // pred_region
      _
    $region9: #{tpu_custom_call.1} parent=1 // pred_fallthru
      _
    // Predicated region
    $region10: #{tpu_custom_call.1} parent=1 // pred_check
      _
    $region11: #{tpu_custom_call.1} parent=1 // pred_check_branch
      %17 = sbr.rel (0) target = $region13
    $region12: #{tpu_custom_call.1} parent=1 // pred_region
      %s19 = ssub.s32 16, 16
      %20 = vsyncadd [#allocation6], %s19
      %s22 = sshll.u32 %s2, 4
      %s23 = int_to_ptr.vmem [resolvable:$true] %s22
      %25 = dma.vmem_to_smem %s23, 16, [#allocation4], [#allocation6]
    $region13: #{tpu_custom_call.1} parent=1 // pred_fallthru
      _
    // Predicated region
    $region14: #{tpu_custom_call.1} parent=1 // pred_check
      _
    $region15: #{tpu_custom_call.1} parent=1 // pred_check_branch
      %27 = sbr.rel (0) target = $region17
    $region16: #{tpu_custom_call.1} parent=1 // pred_region
      _
    $region17: #{tpu_custom_call.1} parent=1 // pred_fallthru
      _
    // Predicated region
    $region18: #{tpu_custom_call.1} parent=1 // pred_check
      _
    $region19: #{tpu_custom_call.1} parent=1 // pred_check_branch
      %29 = sbr.rel (0) target = $region21
    $region20: #{tpu_custom_call.1} parent=1 // pred_region
      %30 = dma.done [#allocation6], 16
    $region21: #{tpu_custom_call.1} parent=1 // pred_fallthru
      _
    %31 = sfence
    %p32 = scmp.eq.s32.totalorder 0, 0
    // Predicated region
    $region22: #{tpu_custom_call.1} parent=1 // pred_check
      %p33 = pneg %p32
    $region23: #{tpu_custom_call.1} parent=1 // pred_check_branch
      %35 = sbr.rel (%p33) target = $region25
    $region24: #{tpu_custom_call.1} parent=1 // pred_region
      %vm36 = vcmask 0
      %37 = vst.msk [vmem:[#allocation2] sm:$0x1] %vm36, 0.0
    $region25: #{tpu_custom_call.1} parent=1 // pred_fallthru
      _
    %s38 = sld [smem:[#allocation4]]
    %s39 = sld [smem:[#allocation4 + $0x1]]
    %s40 = sld [smem:[#allocation4 + $0x2]]
    %s41 = sld [smem:[#allocation3]]
    %v42 = vld [vmem:[%s0] sm:$0xff]
    %v43 = vld [vmem:[%s0 + $0x8] sm:$0xff]
    %v44 = vld [vmem:[%s0 + $0x10] sm:$0xff]
    %v45 = vld [vmem:[%s0 + $0x18] sm:$0xff]
    %v46 = vld [vmem:[%s1] sm:$0x1]
    %v47 = vstv %s38
    %vm48 = vcmask 261120
    %v50 = vsel %vm48, %v46, 0
    %52 = vmatprep.subr.mxu0 0.0
    %53 = vmatpush1.msra.mxu0 %v42
    %54 = vmatprep.subr.mxu0 0.0
    %55 = vmatpush1.msra.mxu0 %v43
    %56 = vmatprep.subr.mxu0 0.0
    %57 = vmatpush1.msra.mxu0 %v44
    %58 = vmatprep.subr.mxu0 0.0
    %59 = vmatpush1.msra.mxu0 %v45
    %60 = vmatprep.subr.mxu0 0.0
    %61 = vmatpush1.msra.mxu0 0.0
    %62 = vmatprep.subr.mxu0 0.0
    %63 = vmatpush1.msra.mxu0 0.0
    %64 = vmatprep.subr.mxu0 0.0
    %65 = vmatpush1.msra.mxu0 0.0
    %66 = vmatprep.subr.mxu0 0.0
    %67 = vmatpush1.msra.mxu0 0.0
    %68 = vmatprep.subr.mxu0 0.0
    %69 = vmatpush1.msra.mxu0 0.0
    %70 = vmatprep.subr.mxu0 0.0
    %71 = vmatpush1.msra.mxu0 0.0
    %72 = vmatprep.subr.mxu0 0.0
    %73 = vmatpush1.msra.mxu0 0.0
    %74 = vmatprep.subr.mxu0 0.0
    %75 = vmatpush1.msra.mxu0 0.0
    %76 = vmatprep.subr.mxu0 0.0
    %77 = vmatpush1.msra.mxu0 0.0
    %78 = vmatprep.subr.mxu0 0.0
    %79 = vmatpush1.msra.mxu0 0.0
    %80 = vmatprep.subr.mxu0 0.0
    %81 = vmatpush1.msra.mxu0 0.0
    %82 = vmatprep.subr.mxu0 0.0
    %83 = vmatpush1.msra.mxu0 0.0
    %84 = vmatprep.subr.mxu0 0.0
    %85 = vmatpush1.msra.mxu0 0.0
    %86 = vmatprep.subr.mxu0 0.0
    %87 = vmatpush1.msra.mxu0 0.0
    %88 = vmatprep.subr.mxu0 0.0
    %89 = vmatpush1.msra.mxu0 0.0
    %90 = vmatprep.subr.mxu0 0.0
    %91 = vmatpush1.msra.mxu0 0.0
    %92 = vmatprep.subr.mxu0 0.0
    %93 = vmatpush1.msra.mxu0 0.0
    %94 = vmatprep.subr.mxu0 0.0
    %95 = vmatpush1.msra.mxu0 0.0
    %96 = vmatprep.subr.mxu0 0.0
    %97 = vmatpush1.msra.mxu0 0.0
    %98 = vmatprep.subr.mxu0 0.0
    %99 = vmatpush1.msra.mxu0 0.0
    %100 = vmatprep.subr.mxu0 0.0
    %101 = vmatpush1.msra.mxu0 0.0
    %102 = vmatprep.subr.mxu0 0.0
    %103 = vmatpush1.msra.mxu0 0.0
    %104 = vmatprep.subr.mxu0 0.0
    %105 = vmatpush1.msra.mxu0 0.0
    %106 = vmatprep.subr.mxu0 0.0
    %107 = vmatpush1.msra.mxu0 0.0
    %108 = vmatprep.subr.mxu0 0.0
    %109 = vmatpush1.msra.mxu0 0.0
    %110 = vmatprep.subr.mxu0 0.0
    %111 = vmatpush1.msra.mxu0 0.0
    %112 = vmatprep.subr.mxu0 0.0
    %113 = vmatpush1.msra.mxu0 0.0
    %114 = vmatprep.subr.mxu0 0.0
    %115 = vmatpush1.msra.mxu0 0.0
    %116 = vmatprep.mubr.f32.mxu0 0.0
    %117 = vmatmul.mubr.f32.gmra.mrb[0].mxu0 %v50
    %v118 = vpop.f32.mrb[0].mxu0
    %v119 = vadd.f32 %v47, %v118
    %v120 = vpop.f32.mrb[0].mxu0
    %121 = vdwg.mxu0
    %v122 = vxor.u32 %v119, 2147483648
    %v123 = vmul.f32 %v122, 1.442695
    %v124 = vpow.pop %v123
    %v125 = vadd.f32 %v124, 1.0
    %v126 = vrcp.pop %v125
    %v127 = vmul.f32 1.0, %v126
    %s128 = smul.u32 0, 8
    %v129 = vlaneseq
    %v130 = vand.u32 %v129, 127
    %v131 = vstv %s128
    %v132 = vadd.s32 %v131, %v130
    %v133 = vstv %s41
    %vm134 = vcmp.lt.s32.totalorder %v132, %v133
    %vm135 = vcmp.lt.s32.totalorder %v132, 8
    %v136 = vstv %s39
    %v137 = vstv %s40
    %v138 = vsel %vm134, %v136, %v137
    %v139 = vsub.f32 %v127, %v138
    %v140 = vand.u32 2147483647, %v139
    %v141 = vsub.f32 1.0, %v140
    %v142 = vsel %vm134, %v140, %v141
    %v143 = vlog2.pop %v142
    %v144 = vmul.f32 %v143, 0.6931472
    %v145 = vmax.f32 %v144, -100.0
    %v146 = vsub.f32 0.0, %v145
    %v147 = vsel %vm135, %v146, 0.0
    %v148 = vld [vmem:[#allocation2] sm:$0x1]
    %vm149 = vcmask 57344
    %v150 = vsel %vm149, %v147, 0.0
    %151 = vadd.xlane.f32.xlu0 %v150
    %v152 = vpop.xlane.xlu0 %151
    %v153 = vadd.f32 %v148, %v152
    %vm154 = vcmask 0
    %155 = vst.msk [vmem:[#allocation2] sm:$0x1] %vm154, %v153
    // Predicated region
    $region26: #{tpu_custom_call.1} parent=1 // pred_check
      %p156 = pneg %p32
    $region27: #{tpu_custom_call.1} parent=1 // pred_check_branch
      %158 = sbr.rel (%p156) target = $region29
    $region28: #{tpu_custom_call.1} parent=1 // pred_region
      %v159 = vld [vmem:[#allocation2] sm:$0x1]
      %v160 = vmul.f32 %v159, 0.125
      %161 = vst.msk [vmem:[#allocation7] sm:$0x1] %vm154, %v160
    $region29: #{tpu_custom_call.1} parent=1 // pred_fallthru
      _
    // Predicated region
    $region30: #{tpu_custom_call.1} parent=1 // pred_check
      _
    $region31: #{tpu_custom_call.1} parent=1 // pred_check_branch
      %163 = sbr.rel (0) target = $region33
    $region32: #{tpu_custom_call.1} parent=1 // pred_region
      %s165 = ssub.s32 16, 16
      %166 = vsyncadd [#allocation5], %s165
      %s168 = sshll.u32 [#allocation7], 4
      %s169 = int_to_ptr.vmem [resolvable:$true] %s168
      %171 = dma.vmem_to_hbm [thread:$0]  %s169, 16, %s4, [#allocation5]
    $region33: #{tpu_custom_call.1} parent=1 // pred_fallthru
      _
    // Predicated region
    $region34: #{tpu_custom_call.1} parent=1 // pred_check
      _
    $region35: #{tpu_custom_call.1} parent=1 // pred_check_branch
      %173 = sbr.rel (0) target = $region37
    $region36: #{tpu_custom_call.1} parent=1 // pred_region
      %174 = dma.done [#allocation5], 16
    $region37: #{tpu_custom_call.1} parent=1 // pred_fallthru
      _
    %175 = vsyncpa [#allocation5], 1
    %176 = vsyncpa [#allocation6], 1

</llo_original>
